<compile_context>
chip_gen: v7x
topology: tpu7x:2x2x1
jax: 0.10.0
libtpu: 0.0.40
codegen_flags: <defaults>
</compile_context>

<pallas_src>
import functools

import jax
import jax.numpy as jnp
from jax.experimental import pallas as pl
from jax.experimental.pallas import tpu as pltpu


def _round_up(x, m):
    return (x + m - 1) // m * m


def _int_pow(x, n):
    """x ** n for a static positive int n via exponentiation by squaring."""
    acc = None
    while n:
        if n & 1:
            acc = x if acc is None else acc * x
        n >>= 1
        if n:
            x = x * x
    return acc


def md_loss_kernel(la_ref, lb_ref, tgt_ref, out_ref, *,
                   temp, temp_int, lam, total_b):
    i = pl.program_id(0)

    la = la_ref[...].astype(jnp.float32)          # (TB, C)
    lb = lb_ref[...].astype(jnp.float32)          # (TB, C)
    TB, C = la.shape
    inv_temp = 1.0 / temp
    scale = temp * temp * lam

    # --- shared row maxes (reused for the tempered path since temp > 0) ---
    m_a = jnp.max(la, axis=1, keepdims=True)
    m_b = jnp.max(lb, axis=1, keepdims=True)
    s_a = la - m_a
    s_b = lb - m_b

    # --- tempered softmax: one exp pass gives both p and log-denominator ---
    s_a_t = s_a * inv_temp
    s_b_t = s_b * inv_temp
    e_a_t = jnp.exp(s_a_t)
    e_b_t = jnp.exp(s_b_t)
    den_a_t = jnp.sum(e_a_t, axis=1, keepdims=True)
    den_b_t = jnp.sum(e_b_t, axis=1, keepdims=True)
    pa = e_a_t * pl.reciprocal(den_a_t, approx=True)
    pb = e_b_t * pl.reciprocal(den_b_t, approx=True)

    # --- untempered exponentials (for the CE log-denominators) ---
    if temp_int is not None:
        # exp(s) == exp(s/T) ** T : repeated squaring on the VPU, EUP stays free.
        e_a = _int_pow(e_a_t, temp_int)
        e_b = _int_pow(e_b_t, temp_int)
    else:
        e_a = jnp.exp(s_a)
        e_b = jnp.exp(s_b)
    lden_a = jnp.log(jnp.sum(e_a, axis=1, keepdims=True))
    lden_b = jnp.log(jnp.sum(e_b, axis=1, keepdims=True))

    # --- valid-row mask (last tile may contain padded rows) ---
    row = jax.lax.broadcasted_iota(jnp.int32, (TB, 1), 0) + i * TB
    valid = (row < total_b).astype(jnp.float32)   # (TB, 1)

    # --- symmetric KL, fused:  sum((pa - pb) * (log pa - log pb)) ---
    # log pa - log pb = (s_a - s_b)/T - (log den_a_t - log den_b_t)
    dlog = jnp.log(den_a_t) - jnp.log(den_b_t)                       # (TB, 1)
    diff = (s_a_t - s_b_t) - dlog
    kl_row = jnp.sum((pa - pb) * diff, axis=1, keepdims=True)        # (TB, 1)

    # --- both CE terms fused; gather via compare+where (no f32 one-hot) ---
    # -(lsa[t] + lsb[t]) = (lden_a + lden_b) - (s_a[t] + s_b[t])
    tgt = tgt_ref[...]                                               # (TB, 1)
    col = jax.lax.broadcasted_iota(jnp.int32, (TB, C), 1)
    gathered = jnp.sum(jnp.where(col == tgt, s_a + s_b, 0.0),
                       axis=1, keepdims=True)                        # (TB, 1)
    ce_row = (lden_a + lden_b) - gathered                            # (TB, 1)

    # Unnormalized partial sum for this tile (global /B applied at the end).
    partial = jnp.sum(valid * (ce_row + kl_row * scale))

    @pl.when(i == 0)
    def _():
        out_ref[0, 0] = 0.0

    out_ref[0, 0] += partial

    @pl.when(i == pl.num_programs(0) - 1)
    def _():
        out_ref[0, 0] = out_ref[0, 0] * (1.0 / total_b)


def mutual_distillation_loss(logits_a, logits_b, targets,
                             temp=4.0, lambda_hyperparam=0.1,
                             block_rows=None):
    B, C = logits_a.shape

    if block_rows is None:
        # ~2 MiB per input block (safe for v7x's 64 MiB VMEM with
        # double-buffering of two logits streams), multiple of 8, but never
        # larger than needed.
        tb = max(8, (2 * 1024 * 1024 // (4 * C)) // 8 * 8)
        tb = min(tb, _round_up(B, 8))
    else:
        tb = block_rows

    Bp = _round_up(B, tb)
    n_blocks = Bp // tb
    pad = Bp - B

    la = logits_a
    lb = logits_b
    tgt = targets.astype(jnp.int32).reshape(B, 1)
    if pad:
        la = jnp.pad(la, ((0, pad), (0, 0)))
        lb = jnp.pad(lb, ((0, pad), (0, 0)))
        tgt = jnp.pad(tgt, ((0, pad), (0, 0)))

    t = float(temp)
    temp_int = int(t) if (t.is_integer() and 1.0 <= t <= 16.0) else None

    kernel = functools.partial(md_loss_kernel,
                               temp=t,
                               temp_int=temp_int,
                               lam=float(lambda_hyperparam),
                               total_b=int(B))

    n_exp = 2 if temp_int is not None else 4
    cost = pl.CostEstimate(
        flops=16 * Bp * C,
        transcendentals=n_exp * Bp * C,     # full-tile exps (+ per-row logs)
        bytes_accessed=2 * Bp * C * 4 + Bp * 4 + 4,
    )

    out = pl.pallas_call(
        kernel,
        out_shape=jax.ShapeDtypeStruct((1, 1), jnp.float32),
        grid=(n_blocks,),
        in_specs=[
            pl.BlockSpec((tb, C), lambda i: (i, 0)),
            pl.BlockSpec((tb, C), lambda i: (i, 0)),
            pl.BlockSpec((tb, 1), lambda i: (i, 0)),
        ],
        out_specs=pl.BlockSpec((1, 1), lambda i: (0, 0),
                               memory_space=pltpu.SMEM),
        compiler_params=pltpu.CompilerParams(
            dimension_semantics=("arbitrary",),   # reduction over row tiles
            vmem_limit_bytes=32 * 1024 * 1024,
        ),
        cost_estimate=cost,
    )(la, lb, tgt)
    return out[0, 0]


def _reference(logits_a, logits_b, targets, temp=4.0, lam=0.1):
    pa = jax.nn.softmax(logits_a / temp, axis=1)
    pb = jax.nn.softmax(logits_b / temp, axis=1)
    B = logits_a.shape[0]
    kl_ab = jnp.sum(pb * (jnp.log(pb) - jnp.log(pa))) / B
    kl_ba = jnp.sum(pa * (jnp.log(pa) - jnp.log(pb))) / B
    distill = (kl_ab + kl_ba) * temp ** 2 * lam
    lsa = jax.nn.log_softmax(logits_a, axis=1)
    lsb = jax.nn.log_softmax(logits_b, axis=1)
    ce = (-jnp.mean(jnp.take_along_axis(lsa, targets[:, None], axis=1))
          - jnp.mean(jnp.take_along_axis(lsb, targets[:, None], axis=1)))
    return ce + distill


if __name__ == "__main__":
    key = jax.random.PRNGKey(0)
    ka, kb, kt = jax.random.split(key, 3)

    # Small demo shape consistent with the module: (B, C) logits + int targets.
    B, C = 8, 32
    logits_a = jax.random.normal(ka, (B, C), dtype=jnp.float32)
    logits_b = jax.random.normal(kb, (B, C), dtype=jnp.float32)
    targets = jax.random.randint(kt, (B,), 0, C, dtype=jnp.int32)

    loss = mutual_distillation_loss(logits_a, logits_b, targets)
    jax.block_until_ready(loss)
    ref = _reference(logits_a, logits_b, targets)
    assert jnp.allclose(loss, ref, rtol=1e-4, atol=1e-4), (loss, ref)

    # Exercise the multi-tile / padded-tail path (B not a multiple of the tile)
    # and a non-integer temperature (generic exp path).
    B2 = 20
    k2a, k2b, k2t = jax.random.split(jax.random.PRNGKey(1), 3)
    la2 = jax.random.normal(k2a, (B2, C), dtype=jnp.float32)
    lb2 = jax.random.normal(k2b, (B2, C), dtype=jnp.float32)
    tg2 = jax.random.randint(k2t, (B2,), 0, C, dtype=jnp.int32)
    loss2 = mutual_distillation_loss(la2, lb2, tg2, block_rows=8)
    jax.block_until_ready(loss2)
    ref2 = _reference(la2, lb2, tg2)
    assert jnp.allclose(loss2, ref2, rtol=1e-4, atol=1e-4), (loss2, ref2)

    loss3 = mutual_distillation_loss(la2, lb2, tg2, temp=2.5,
                                     lambda_hyperparam=0.3, block_rows=8)
    jax.block_until_ready(loss3)
    ref3 = _reference(la2, lb2, tg2, temp=2.5, lam=0.3)
    assert jnp.allclose(loss3, ref3, rtol=1e-4, atol=1e-4), (loss3, ref3)

    print("KERNEL_OK")
</pallas_src>

<mosaic_0001>
module attributes {stable_mosaic.version = 11 : i64} {
  func.func @md_loss_kernel(%arg0: i32, %arg1: memref<8x32xf32, #tpu.memory_space<vmem>>, %arg2: memref<8x32xf32, #tpu.memory_space<vmem>>, %arg3: memref<8x1xi32, #tpu.memory_space<vmem>>, %arg4: memref<1x1xf32, #tpu.memory_space<smem>>) attributes {dimension_semantics = [#tpu.dimension_semantics<arbitrary>], iteration_bounds = array<i64: 1>, scalar_prefetch = 0 : i64, scratch_operands = 0 : i64, tpu.core_type = #tpu.core_type<tc>, window_params = [{transform_indices = @transform_0, window_bounds = array<i64: 8, 32>}, {transform_indices = @transform_1, window_bounds = array<i64: 8, 32>}, {transform_indices = @transform_2, window_bounds = array<i64: 8, 1>}, {transform_indices = @transform_3, window_bounds = array<i64: 1, 1>}]} {
    %c0 = arith.constant 0 : index
    %c0_0 = arith.constant 0 : index
    %0 = vector.load %arg1[%c0, %c0_0] : memref<8x32xf32, #tpu.memory_space<vmem>>, vector<8x32xf32>
    %c0_1 = arith.constant 0 : index
    %c0_2 = arith.constant 0 : index
    %1 = vector.load %arg2[%c0_1, %c0_2] : memref<8x32xf32, #tpu.memory_space<vmem>>, vector<8x32xf32>
    %cst = arith.constant dense<0xFF800000> : vector<8xf32>
    %2 = vector.multi_reduction <maximumf>, %0, %cst [1] : vector<8x32xf32> to vector<8xf32>
    %3 = vector.shape_cast %2 : vector<8xf32> to vector<8x1xf32>
    %cst_3 = arith.constant dense<0xFF800000> : vector<8xf32>
    %4 = vector.multi_reduction <maximumf>, %1, %cst_3 [1] : vector<8x32xf32> to vector<8xf32>
    %5 = vector.shape_cast %4 : vector<8xf32> to vector<8x1xf32>
    %6 = vector.broadcast %3 : vector<8x1xf32> to vector<8x32xf32>
    %7 = arith.subf %0, %6 : vector<8x32xf32>
    %8 = vector.broadcast %5 : vector<8x1xf32> to vector<8x32xf32>
    %9 = arith.subf %1, %8 : vector<8x32xf32>
    %cst_4 = arith.constant 2.500000e-01 : f32
    %10 = vector.broadcast %cst_4 : f32 to vector<8x32xf32>
    %11 = arith.mulf %7, %10 : vector<8x32xf32>
    %cst_5 = arith.constant 2.500000e-01 : f32
    %12 = vector.broadcast %cst_5 : f32 to vector<8x32xf32>
    %13 = arith.mulf %9, %12 : vector<8x32xf32>
    %14 = math.exp %11 : vector<8x32xf32>
    %15 = math.exp %13 : vector<8x32xf32>
    %cst_6 = arith.constant dense<0.000000e+00> : vector<8xf32>
    %16 = vector.multi_reduction <add>, %14, %cst_6 [1] : vector<8x32xf32> to vector<8xf32>
    %17 = vector.shape_cast %16 : vector<8xf32> to vector<8x1xf32>
    %cst_7 = arith.constant dense<0.000000e+00> : vector<8xf32>
    %18 = vector.multi_reduction <add>, %15, %cst_7 [1] : vector<8x32xf32> to vector<8xf32>
    %19 = vector.shape_cast %18 : vector<8xf32> to vector<8x1xf32>
    %20 = tpu.reciprocal %17 {approx = true} : vector<8x1xf32> -> vector<8x1xf32>
    %21 = vector.broadcast %20 : vector<8x1xf32> to vector<8x32xf32>
    %22 = arith.mulf %14, %21 : vector<8x32xf32>
    %23 = tpu.reciprocal %19 {approx = true} : vector<8x1xf32> -> vector<8x1xf32>
    %24 = vector.broadcast %23 : vector<8x1xf32> to vector<8x32xf32>
    %25 = arith.mulf %15, %24 : vector<8x32xf32>
    %26 = arith.mulf %14, %14 : vector<8x32xf32>
    %27 = arith.mulf %26, %26 : vector<8x32xf32>
    %28 = arith.mulf %15, %15 : vector<8x32xf32>
    %29 = arith.mulf %28, %28 : vector<8x32xf32>
    %cst_8 = arith.constant dense<0.000000e+00> : vector<8xf32>
    %30 = vector.multi_reduction <add>, %27, %cst_8 [1] : vector<8x32xf32> to vector<8xf32>
    %31 = vector.shape_cast %30 : vector<8xf32> to vector<8x1xf32>
    %32 = math.log %31 : vector<8x1xf32>
    %cst_9 = arith.constant dense<0.000000e+00> : vector<8xf32>
    %33 = vector.multi_reduction <add>, %29, %cst_9 [1] : vector<8x32xf32> to vector<8xf32>
    %34 = vector.shape_cast %33 : vector<8xf32> to vector<8x1xf32>
    %35 = math.log %34 : vector<8x1xf32>
    %36 = tpu.iota {dimensions = array<i32: 0>} : vector<8x1xi32>
    %c8_i32 = arith.constant 8 : i32
    %37 = arith.muli %arg0, %c8_i32 : i32
    %38 = vector.broadcast %37 : i32 to vector<8x1xi32>
    %39 = arith.addi %36, %38 : vector<8x1xi32>
    %c8_i32_10 = arith.constant 8 : i32
    %40 = vector.broadcast %c8_i32_10 : i32 to vector<8x1xi32>
    %41 = arith.cmpi slt, %39, %40 : vector<8x1xi32>
    %42 = arith.extui %41 : vector<8x1xi1> to vector<8x1xi32>
    %43 = arith.sitofp %42 : vector<8x1xi32> to vector<8x1xf32>
    %44 = math.log %17 : vector<8x1xf32>
    %45 = math.log %19 : vector<8x1xf32>
    %46 = arith.subf %44, %45 : vector<8x1xf32>
    %47 = arith.subf %11, %13 : vector<8x32xf32>
    %48 = vector.broadcast %46 : vector<8x1xf32> to vector<8x32xf32>
    %49 = arith.subf %47, %48 : vector<8x32xf32>
    %50 = arith.subf %22, %25 : vector<8x32xf32>
    %51 = arith.mulf %50, %49 : vector<8x32xf32>
    %cst_11 = arith.constant dense<0.000000e+00> : vector<8xf32>
    %52 = vector.multi_reduction <add>, %51, %cst_11 [1] : vector<8x32xf32> to vector<8xf32>
    %53 = vector.shape_cast %52 : vector<8xf32> to vector<8x1xf32>
    %c0_12 = arith.constant 0 : index
    %c0_13 = arith.constant 0 : index
    %54 = vector.load %arg3[%c0_12, %c0_13] : memref<8x1xi32, #tpu.memory_space<vmem>>, vector<8x1xi32>
    %55 = tpu.iota {dimensions = array<i32: 1>} : vector<8x32xi32>
    %56 = vector.broadcast %54 : vector<8x1xi32> to vector<8x32xi32>
    %57 = arith.cmpi eq, %55, %56 : vector<8x32xi32>
    %58 = arith.addf %7, %9 : vector<8x32xf32>
    %cst_14 = arith.constant 0.000000e+00 : f32
    %59 = vector.broadcast %cst_14 : f32 to vector<8x32xf32>
    %60 = arith.select %57, %58, %59 : vector<8x32xi1>, vector<8x32xf32>
    %cst_15 = arith.constant dense<0.000000e+00> : vector<8xf32>
    %61 = vector.multi_reduction <add>, %60, %cst_15 [1] : vector<8x32xf32> to vector<8xf32>
    %62 = vector.shape_cast %61 : vector<8xf32> to vector<8x1xf32>
    %63 = arith.addf %32, %35 : vector<8x1xf32>
    %64 = arith.subf %63, %62 : vector<8x1xf32>
    %cst_16 = arith.constant 1.600000e+00 : f32
    %65 = vector.broadcast %cst_16 : f32 to vector<8x1xf32>
    %66 = arith.mulf %53, %65 : vector<8x1xf32>
    %67 = arith.addf %64, %66 : vector<8x1xf32>
    %68 = arith.mulf %43, %67 : vector<8x1xf32>
    %69 = vector.shape_cast %68 : vector<8x1xf32> to vector<1x8x1xf32>
    %cst_17 = arith.constant dense<0.000000e+00> : vector<1xf32>
    %70 = vector.multi_reduction <add>, %69, %cst_17 [1, 2] : vector<1x8x1xf32> to vector<1xf32>
    %71 = vector.shape_cast %70 : vector<1xf32> to vector<1x1x1xf32>
    %72 = vector.extract %71[0, 0, 0] : f32 from vector<1x1x1xf32>
    %c0_i32 = arith.constant 0 : i32
    %73 = arith.cmpi eq, %arg0, %c0_i32 : i32
    %74 = arith.extui %73 : i1 to i32
    %c0_i32_18 = arith.constant 0 : i32
    %75 = arith.cmpi ne, %74, %c0_i32_18 : i32
    scf.if %75 {
      %cst_25 = arith.constant 0.000000e+00 : f32
      %c0_26 = arith.constant 0 : index
      %c0_27 = arith.constant 0 : index
      %82 = memref.load %arg4[%c0_26, %c0_27] : memref<1x1xf32, #tpu.memory_space<smem>>
      memref.store %cst_25, %arg4[%c0_26, %c0_27] : memref<1x1xf32, #tpu.memory_space<smem>>
    } else {
    }
    %c0_19 = arith.constant 0 : index
    %c0_20 = arith.constant 0 : index
    %76 = memref.load %arg4[%c0_19, %c0_20] : memref<1x1xf32, #tpu.memory_space<smem>>
    %77 = arith.addf %76, %72 : f32
    %c0_21 = arith.constant 0 : index
    %c0_22 = arith.constant 0 : index
    %78 = memref.load %arg4[%c0_21, %c0_22] : memref<1x1xf32, #tpu.memory_space<smem>>
    memref.store %77, %arg4[%c0_21, %c0_22] : memref<1x1xf32, #tpu.memory_space<smem>>
    %c0_i32_23 = arith.constant 0 : i32
    %79 = arith.cmpi eq, %arg0, %c0_i32_23 : i32
    %80 = arith.extui %79 : i1 to i32
    %c0_i32_24 = arith.constant 0 : i32
    %81 = arith.cmpi ne, %80, %c0_i32_24 : i32
    scf.if %81 {
      %c0_25 = arith.constant 0 : index
      %c0_26 = arith.constant 0 : index
      %82 = memref.load %arg4[%c0_25, %c0_26] : memref<1x1xf32, #tpu.memory_space<smem>>
      %cst_27 = arith.constant 1.250000e-01 : f32
      %83 = arith.mulf %82, %cst_27 : f32
      %c0_28 = arith.constant 0 : index
      %c0_29 = arith.constant 0 : index
      %84 = memref.load %arg4[%c0_28, %c0_29] : memref<1x1xf32, #tpu.memory_space<smem>>
      memref.store %83, %arg4[%c0_28, %c0_29] : memref<1x1xf32, #tpu.memory_space<smem>>
    } else {
    }
    return
  }
  func.func @transform_0(%arg0: i32) -> (i32, i32) {
    %c0_i32 = arith.constant 0 : i32
    %c0_i32_0 = arith.constant 0 : i32
    return %arg0, %c0_i32 : i32, i32
  }
  func.func @transform_1(%arg0: i32) -> (i32, i32) {
    %c0_i32 = arith.constant 0 : i32
    %c0_i32_0 = arith.constant 0 : i32
    return %arg0, %c0_i32 : i32, i32
  }
  func.func @transform_2(%arg0: i32) -> (i32, i32) {
    %c0_i32 = arith.constant 0 : i32
    %c0_i32_0 = arith.constant 0 : i32
    return %arg0, %c0_i32 : i32, i32
  }
  func.func @transform_3(%arg0: i32) -> (i32, i32) {
    %c0_i32 = arith.constant 0 : i32
    %c0_i32_0 = arith.constant 0 : i32
    %c0_i32_1 = arith.constant 0 : i32
    return %c0_i32, %c0_i32_0 : i32, i32
  }
}

</mosaic_0001>

<llo_original>
// kernel: tpu_custom_call.1
$region0: #{tpu_custom_call.1}
  #allocation0 [shape = 'u32[]', space=smem, size = 0x4, offset = 0x4, fixed_abs, tag = 'smem constant byte address 0x4 - core index']
  #allocation1 [shape = 'u32[144,128]{1,0:T(1,128)}', space=vmem, size = 0x12000, scoped, tag = 'internal scratch']
  %s0 = inlined_call_operand.vmem [shape: f32[8,32], index: 0, kind: input, shape index: {}]
  %s1 = inlined_call_operand.hbm [shape: f32[8,32], index: 1, kind: input, shape index: {}]
  %s2 = inlined_call_operand.vmem [shape: s32[8,1], index: 2, kind: input, shape index: {}]
  %s3 = inlined_call_operand.hbm [shape: f32[1,1], index: 3, kind: output, shape index: {}]
  %s4 = sld [smem:[#allocation0]]
  $region34: #{tpu_custom_call.1} parent=0
    _
  %s6 = ssub.s32 1, %s4
  %s7 = scalar_select 0, %s6, %s4
  $region1: #{tpu_custom_call.1} parent=0
    #allocation2 [shape = 'u8[4096]{0}', space=vmem, size = 0x1000, scoped, tag = 'input window, operand 1, single buffered']
    #allocation3 [shape = 's32[1]{0}', space=sflag, size = 0x4, scoped, tag = 'scoped memory for tpu_custom_call.1']
    #allocation4 [shape = 's32[1]{0}', space=sflag, size = 0x4, scoped, tag = 'scoped memory for tpu_custom_call.1']
    #allocation5 [shape = 'u8[512]{0}', space=smem, size = 0x200, scoped, tag = 'output window, operand 0, single buffered']
    %8 = vsyncpa [#allocation3], 0
    %9 = vsyncpa [#allocation4], 0
    // Predicated region
    $region2: #{tpu_custom_call.1} parent=1 // pred_check
      _
    $region3: #{tpu_custom_call.1} parent=1 // pred_check_branch
      %11 = sbr.rel (0) target = $region5
    $region4: #{tpu_custom_call.1} parent=1 // pred_region
      _
    $region5: #{tpu_custom_call.1} parent=1 // pred_fallthru
      _
    // Predicated region
    $region6: #{tpu_custom_call.1} parent=1 // pred_check
      _
    $region7: #{tpu_custom_call.1} parent=1 // pred_check_branch
      %13 = sbr.rel (0) target = $region9
    $region8: #{tpu_custom_call.1} parent=1 // pred_region
      %s15 = ssub.s32 128, 128
      %16 = vsyncadd [#allocation3], %s15
      %s18 = sshll.u32 [#allocation2], 4
      %s19 = int_to_ptr.vmem [resolvable:$true] %s18
      %21 = dma.hbm_to_vmem [thread:$0]  %s1, 128, %s19, [#allocation3]
    $region9: #{tpu_custom_call.1} parent=1 // pred_fallthru
      _
    // Predicated region
    $region10: #{tpu_custom_call.1} parent=1 // pred_check
      _
    $region11: #{tpu_custom_call.1} parent=1 // pred_check_branch
      %23 = sbr.rel (0) target = $region13
    $region12: #{tpu_custom_call.1} parent=1 // pred_region
      _
    $region13: #{tpu_custom_call.1} parent=1 // pred_fallthru
      _
    // Predicated region
    $region14: #{tpu_custom_call.1} parent=1 // pred_check
      _
    $region15: #{tpu_custom_call.1} parent=1 // pred_check_branch
      %25 = sbr.rel (0) target = $region17
    $region16: #{tpu_custom_call.1} parent=1 // pred_region
      %26 = dma.done [#allocation3], 128
    $region17: #{tpu_custom_call.1} parent=1 // pred_fallthru
      _
    %v27 = vld [vmem:[%s0] sm:$0xff]
    %v28 = vld [vmem:[#allocation2] sm:$0xff]
    %vm29 = vcmask 261120
    %v30 = vsel %vm29, %v27, -inf
    %31 = vmax.xlane.f32.xlu0 %v30
    %v32 = vpop.xlane.xlu0 %31
    %v33 = vsel %vm29, %v28, -inf
    %34 = vmax.xlane.f32.xlu0 %v33
    %v35 = vpop.xlane.xlu0 %34
    %v36 = vsub.f32 %v27, %v32
    %v37 = vsub.f32 %v28, %v35
    %v38 = vmul.f32 %v36, 0.25
    %v39 = vmul.f32 %v37, 0.25
    %v40 = vmul.f32 %v38, 1.442695
    %v41 = vpow.pop %v40
    %v42 = vmul.f32 %v39, 1.442695
    %v43 = vpow.pop %v42
    %v44 = vsel %vm29, %v41, 0.0
    %45 = vadd.xlane.f32.xlu0 %v44
    %v46 = vpop.xlane.xlu0 %45
    %v47 = vsel %vm29, %v43, 0.0
    %48 = vadd.xlane.f32.xlu0 %v47
    %v49 = vpop.xlane.xlu0 %48
    %v50 = vrcp.pop %v46
    %v51 = vmul.f32 %v41, %v50
    %v52 = vrcp.pop %v49
    %v53 = vmul.f32 %v43, %v52
    %v54 = vmul.f32 %v41, %v41
    %v55 = vmul.f32 %v54, %v54
    %v56 = vmul.f32 %v43, %v43
    %v57 = vmul.f32 %v56, %v56
    %v58 = vsel %vm29, %v55, 0.0
    %59 = vadd.xlane.f32.xlu0 %v58
    %v60 = vpop.xlane.xlu0 %59
    %v61 = vlog2.pop %v60
    %v62 = vmul.f32 %v61, 0.6931472
    %v63 = vsel %vm29, %v57, 0.0
    %64 = vadd.xlane.f32.xlu0 %v63
    %v65 = vpop.xlane.xlu0 %64
    %v66 = vlog2.pop %v65
    %v67 = vmul.f32 %v66, 0.6931472
    %v68 = vlaneseq
    %v69 = vshrl.u32 %v68, 7
    %s70 = smul.u32 0, 8
    %v71 = vstv %s70
    %v72 = vadd.s32 %v69, %v71
    %vm73 = vcmp.lt.s32.totalorder %v72, 8
    %v74 = vsel %vm73, 1, 0
    %v75 = vcvt.s32.f32 %v74
    %v76 = vlog2.pop %v46
    %v77 = vmul.f32 %v76, 0.6931472
    %v78 = vlog2.pop %v49
    %v79 = vmul.f32 %v78, 0.6931472
    %v80 = vsub.f32 %v77, %v79
    %v81 = vsub.f32 %v38, %v39
    %v82 = vsub.f32 %v81, %v80
    %v83 = vsub.f32 %v51, %v53
    %v84 = vmul.f32 %v83, %v82
    %v85 = vsel %vm29, %v84, 0.0
    %86 = vadd.xlane.f32.xlu0 %v85
    %v87 = vpop.xlane.xlu0 %86
    %v88 = vld [vmem:[%s2] sm:$0xff]
    %v89 = vlaneseq
    %v90 = vand.u32 %v89, 127
    %91 = vset.pattern.permute.xlu0 0
    %92 = vperm.xlu0 %91, %v88
    %v93 = vpop.permute.xlu0 %92
    %vm94 = vcmp.eq.s32.totalorder %v90, %v93
    %v95 = vadd.f32 %v36, %v37
    %v96 = vsel %vm94, %v95, 0.0
    %v97 = vsel %vm29, %v96, 0.0
    %98 = vadd.xlane.f32.xlu0 %v97
    %v99 = vpop.xlane.xlu0 %98
    %v100 = vadd.f32 %v62, %v67
    %v101 = vsub.f32 %v100, %v99
    %v102 = vmul.f32 %v87, 1.6
    %v103 = vadd.f32 %v101, %v102
    %v104 = vmul.f32 %v75, %v103
    %vm105 = vcmask 7168
    %v106 = vsel %vm105, %v104, 0.0
    %107 = vadd.xlane.f32.xlu0 %v106
    %v108 = vpop.xlane.xlu0 %107
    %v109 = vrot.slane %v108, 4
    %v110 = vadd.f32 %v108, %v109
    %v111 = vrot.slane %v110, 2
    %v112 = vadd.f32 %v110, %v111
    %v113 = vrot.slane %v112, 1
    %v114 = vadd.f32 %v112, %v113
    %s115 = vtos %v114
    %p116 = scmp.eq.s32.totalorder 0, 0
    // Predicated region
    $region18: #{tpu_custom_call.1} parent=1 // pred_check
      %p117 = pneg %p116
    $region19: #{tpu_custom_call.1} parent=1 // pred_check_branch
      %119 = sbr.rel (%p117) target = $region21
    $region20: #{tpu_custom_call.1} parent=1 // pred_region
      %s120 = scalar_lea.smem [#allocation5], 0
      %121 = sst [smem:[%s120]] 0.0
    $region21: #{tpu_custom_call.1} parent=1 // pred_fallthru
      _
    %s122 = sld [smem:[#allocation5]]
    %s123 = sadd.f32 %s122, %s115
    %s124 = scalar_lea.smem [#allocation5], 0
    %125 = sst [smem:[%s124]] %s123
    // Predicated region
    $region22: #{tpu_custom_call.1} parent=1 // pred_check
      %p126 = pneg %p116
    $region23: #{tpu_custom_call.1} parent=1 // pred_check_branch
      %128 = sbr.rel (%p126) target = $region25
    $region24: #{tpu_custom_call.1} parent=1 // pred_region
      %s129 = sld [smem:[#allocation5]]
      %s130 = smul.f32 %s129, 0.125
      %131 = sst [smem:[%s124]] %s130
    $region25: #{tpu_custom_call.1} parent=1 // pred_fallthru
      _
    // Predicated region
    $region26: #{tpu_custom_call.1} parent=1 // pred_check
      _
    $region27: #{tpu_custom_call.1} parent=1 // pred_check_branch
      %133 = sbr.rel (0) target = $region29
    $region28: #{tpu_custom_call.1} parent=1 // pred_region
      %s135 = ssub.s32 16, 16
      %136 = vsyncadd [#allocation4], %s135
      %139 = dma.smem_to_hbm [#allocation5], 16, %s3, [#allocation4]
    $region29: #{tpu_custom_call.1} parent=1 // pred_fallthru
      _
    // Predicated region
    $region30: #{tpu_custom_call.1} parent=1 // pred_check
      _
    $region31: #{tpu_custom_call.1} parent=1 // pred_check_branch
      %141 = sbr.rel (0) target = $region33
    $region32: #{tpu_custom_call.1} parent=1 // pred_region
      %142 = dma.done [#allocation4], 16
    $region33: #{tpu_custom_call.1} parent=1 // pred_fallthru
      _
    %143 = sfence
    %144 = vsyncpa [#allocation3], 1
    %145 = vsyncpa [#allocation4], 1

</llo_original>
